<compile_context>
chip_gen: v5e
topology: v5e:2x2
jax: 0.10.0
libtpu: 0.0.40
codegen_flags: <defaults>
</compile_context>

<pallas_src>
import numpy as np
import jax
import jax.numpy as jnp
from jax import lax
from jax.experimental import pallas as pl
from jax.experimental.pallas import tpu as pltpu

OUT_LANES = 128  # lane-dense output width (n_up + n_conv must fit)


# ----------------------------------------------------------------------------------
# PyTorch F.interpolate(mode='bilinear', align_corners=False) coefficients.
# ----------------------------------------------------------------------------------
def _bilinear_coeffs(in_size: int, out_size: int):
    scale = in_size / out_size
    i0s, i1s, fracs = [], [], []
    for o in range(out_size):
        src = (o + 0.5) * scale - 0.5
        src = max(src, 0.0)
        lo = int(np.floor(src))
        lo = min(lo, in_size - 1)
        hi = min(lo + 1, in_size - 1)
        i0s.append(lo)
        i1s.append(hi)
        fracs.append(float(src - lo))
    return i0s, i1s, fracs


def _build_resize_matrix(cin, h, w, oh, ow):
    """U: (cin*h*w, cin*oh*ow), NCHW-flat on both sides.  y_flat = x_flat @ U."""
    ih0, ih1, fh = _bilinear_coeffs(h, oh)
    iw0, iw1, fw = _bilinear_coeffs(w, ow)
    U = np.zeros((cin * h * w, cin * oh * ow), np.float64)
    for c in range(cin):
        for o_h in range(oh):
            for o_w in range(ow):
                col = c * oh * ow + o_h * ow + o_w
                for ih, wh in ((ih0[o_h], 1.0 - fh[o_h]), (ih1[o_h], fh[o_h])):
                    for iw, ww in ((iw0[o_w], 1.0 - fw[o_w]), (iw1[o_w], fw[o_w])):
                        U[c * h * w + ih * w + iw, col] += wh * ww
    return U


def _build_conv_matrix(weight_np, oh, ow):
    """C: (cin*oh*ow, cout*oh*ow) for 3x3 conv, stride 1, zero pad 1 (no bias)."""
    cout, cin, kh, kw = weight_np.shape
    C = np.zeros((cin * oh * ow, cout * oh * ow), np.float64)
    for co in range(cout):
        for o_h in range(oh):
            for o_w in range(ow):
                col = co * oh * ow + o_h * ow + o_w
                for ci in range(cin):
                    for dh in range(kh):
                        for dw in range(kw):
                            ih = o_h + dh - kh // 2
                            iw = o_w + dw - kw // 2
                            if 0 <= ih < oh and 0 <= iw < ow:
                                C[ci * oh * ow + ih * ow + iw, col] += weight_np[co, ci, dh, dw]
    return C


def _build_fused_operators(weight, bias, cin, h, w, oh, ow):
    """Host-side, ONE-TIME build (float64 compose, cast to f32 once).

    Returns:
      M_top: (cin*h*w, 128)       x_flat  @ M_top -> [resize(x) | conv(resize(x))]
      M_bot: (k_add_aug, 128)     add_aug @ M_bot -> [    0     | conv(to_add) + bias]
    where add_aug = [to_add_flat | 1 | 0-pad]  (ones column folds the conv bias).
    """
    weight_np = np.asarray(weight, np.float64)
    bias_np = np.asarray(bias, np.float64)
    cout = weight_np.shape[0]

    U = _build_resize_matrix(cin, h, w, oh, ow)          # (HWCin, 4Cin)
    C = _build_conv_matrix(weight_np, oh, ow)            # (4Cin, 4Cout)

    n_up, n_conv = cin * oh * ow, cout * oh * ow
    assert n_up + n_conv <= OUT_LANES, "larger Cout*oh*ow needs output tiling"
    k_x = cin * h * w
    k_add = cin * oh * ow
    k_add_aug = int(np.ceil((k_add + 1) / 8) * 8)        # +1 bias row, 8-aligned

    M_top = np.zeros((k_x, OUT_LANES), np.float64)
    M_top[:, :n_up] = U                                  # out1 = resize(x)
    M_top[:, n_up:n_up + n_conv] = U @ C                 # conv(resize(x)) (fp64 compose)

    M_bot = np.zeros((k_add_aug, OUT_LANES), np.float64)
    M_bot[:k_add, n_up:n_up + n_conv] = C                # + conv(to_add)  (conv is linear)
    M_bot[k_add, n_up:n_up + n_conv] = np.repeat(bias_np, oh * ow)  # + bias (ones row)

    return (jnp.asarray(M_top, jnp.float32), jnp.asarray(M_bot, jnp.float32),
            n_up, n_conv, cout, k_x, k_add, k_add_aug)


# ----------------------------------------------------------------------------------
# Pallas kernel: two accumulating MXU matmuls + one lane-dense (128-wide) store.
# ----------------------------------------------------------------------------------
def _fused_kernel(x_ref, a_ref, mt_ref, mb_ref, o_ref):
    acc = jnp.dot(x_ref[...], mt_ref[...], preferred_element_type=jnp.float32)
    acc = acc + jnp.dot(a_ref[...], mb_ref[...], preferred_element_type=jnp.float32)
    o_ref[...] = acc.astype(o_ref.dtype)


def make_sequential_add(weight, bias, *, cin, h, w, out_size=2):
    """Build the fused operator once; return a jit-compatible forward(inp, to_add)."""
    oh = ow = out_size
    (M_top, M_bot, n_up, n_conv, cout, k_x, k_add, k_add_aug) = _build_fused_operators(
        weight, bias, cin, h, w, oh, ow)

    @jax.jit
    def _forward(inp, to_add):
        n = inp.shape[0]

        # Lane-dense activations.  The big x side is NOT K-padded (its block spans the
        # full K, so the (8,128) constraint does not apply); only the batch axis is
        # padded to a sublane multiple.  The tiny add tensor gets a ones column (bias)
        # and a few zero columns up to the 8-aligned k_add_aug.
        x_flat = inp.reshape(n, k_x).astype(jnp.float32)
        add_flat = jnp.broadcast_to(to_add, (n, cin, oh, ow)).astype(jnp.float32)
        add_flat = add_flat.reshape(n, k_add)
        add_aug = jnp.concatenate([add_flat, jnp.ones((n, 1), jnp.float32)], axis=1)
        add_aug = jnp.pad(add_aug, ((0, 0), (0, k_add_aug - (k_add + 1))))

        n_pad = max(8, -(-n // 8) * 8)
        if n_pad <= 8:
            block_n = n_pad                       # too few rows to split
        else:
            # 256-row tiles fill the 256-deep MXU on v6e/v7x; cap at n_pad//2 so the
            # "parallel" batch axis has >=2 grid steps (both v7x TensorCores).
            block_n = max(8, min(256, (n_pad // 2) // 8 * 8))
            n_pad = -(-n_pad // block_n) * block_n
        x_pad = jnp.pad(x_flat, ((0, n_pad - n), (0, 0)))
        a_pad = jnp.pad(add_aug, ((0, n_pad - n), (0, 0)))
        grid = (n_pad // block_n,)

        out = pl.pallas_call(
            _fused_kernel,
            out_shape=jax.ShapeDtypeStruct((n_pad, OUT_LANES), jnp.float32),
            grid_spec=pltpu.PrefetchScalarGridSpec(
                num_scalar_prefetch=0,
                grid=grid,
                in_specs=[
                    pl.BlockSpec((block_n, k_x), lambda i: (i, 0)),        # x tile
                    pl.BlockSpec((block_n, k_add_aug), lambda i: (i, 0)),  # add tile
                    # Grid-invariant fused operators: fetched once by the pipeline.
                    pl.BlockSpec((k_x, OUT_LANES), lambda i: (0, 0)),
                    pl.BlockSpec((k_add_aug, OUT_LANES), lambda i: (0, 0)),
                ],
                out_specs=pl.BlockSpec((block_n, OUT_LANES), lambda i: (i, 0)),
            ),
            compiler_params=pltpu.CompilerParams(
                dimension_semantics=("parallel",),   # batch split across v7x TCs
            ),
        )(x_pad, a_pad, M_top, M_bot)

        resized = out[:n, :n_up].reshape(n, cin, oh, ow)
        conv_out = out[:n, n_up:n_up + n_conv].reshape(n, cout, oh, ow)
        return resized, conv_out

    def forward(inp, to_add):
        if isinstance(to_add, (list, tuple)):
            to_add = to_add[0]        # single Conv2d in this instantiation
        resized, conv_out = _forward(inp, to_add)
        return [inp, resized, conv_out]

    return forward


# ----------------------------------------------------------------------------------
# Pure-JAX reference matching PyTorch semantics exactly.
# ----------------------------------------------------------------------------------
def reference(inp, to_add, weight, bias, out_size=2):
    if isinstance(to_add, (list, tuple)):
        to_add = to_add[0]
    n, cin, h, w = inp.shape
    ih0, ih1, fh = _bilinear_coeffs(h, out_size)
    iw0, iw1, fw = _bilinear_coeffs(w, out_size)
    rows = []
    for o_h in range(out_size):
        cols = []
        for o_w in range(out_size):
            v = ((1 - fh[o_h]) * (1 - fw[o_w]) * inp[:, :, ih0[o_h], iw0[o_w]]
                 + (1 - fh[o_h]) * fw[o_w] * inp[:, :, ih0[o_h], iw1[o_w]]
                 + fh[o_h] * (1 - fw[o_w]) * inp[:, :, ih1[o_h], iw0[o_w]]
                 + fh[o_h] * fw[o_w] * inp[:, :, ih1[o_h], iw1[o_w]])
            cols.append(v)
        rows.append(jnp.stack(cols, axis=-1))
    resized = jnp.stack(rows, axis=-2)                 # (N, Cin, out, out)
    y = resized + to_add                               # add happens before the Conv2d
    conv_out = lax.conv_general_dilated(
        y.astype(jnp.float32), weight.astype(jnp.float32),
        window_strides=(1, 1), padding=((1, 1), (1, 1)),
        dimension_numbers=("NCHW", "OIHW", "NCHW")) + bias.reshape(1, -1, 1, 1)
    return [inp, resized, conv_out]


if __name__ == "__main__":
    N, CIN, COUT, H, W, OUT = 2, 4, 8, 16, 16, 2

    key = jax.random.PRNGKey(0)
    kx, ka, kw_, kb = jax.random.split(key, 4)

    inp = jax.random.normal(kx, (N, CIN, H, W), dtype=jnp.float32)
    to_add = jax.random.normal(ka, (N, CIN, OUT, OUT), dtype=jnp.float32)

    # Deterministic Conv2d-style init (uniform in [-k, k], k = 1/sqrt(fan_in)).
    fan_in = CIN * 3 * 3
    k = 1.0 / np.sqrt(fan_in)
    weight = jax.random.uniform(kw_, (COUT, CIN, 3, 3), jnp.float32, minval=-k, maxval=k)
    bias = jax.random.uniform(kb, (COUT,), jnp.float32, minval=-k, maxval=k)

    # Operator is built once here (host-side); the returned forward is jit-compiled
    # and contains only the Pallas call plus cheap reshapes/pads.
    forward = make_sequential_add(weight, bias, cin=CIN, h=H, w=W, out_size=OUT)

    outs = forward(inp, to_add)
    outs = [jax.block_until_ready(o) for o in outs]
    refs = reference(inp, to_add, weight, bias, out_size=OUT)
    refs = [jax.block_until_ready(o) for o in refs]

    assert len(outs) == 3
    assert outs[1].shape == (N, CIN, OUT, OUT)
    assert outs[2].shape == (N, COUT, OUT, OUT)
    for got, want in zip(outs, refs):
        np.testing.assert_allclose(np.asarray(got), np.asarray(want), rtol=1e-4, atol=1e-4)

    print("KERNEL_OK")
</pallas_src>

<mosaic_0001>
module attributes {stable_mosaic.version = 11 : i64} {
  func.func @_fused_kernel(%arg0: i32, %arg1: memref<8x1024xf32, #tpu.memory_space<vmem>>, %arg2: memref<8x24xf32, #tpu.memory_space<vmem>>, %arg3: memref<1024x128xf32, #tpu.memory_space<vmem>>, %arg4: memref<24x128xf32, #tpu.memory_space<vmem>>, %arg5: memref<8x128xf32, #tpu.memory_space<vmem>>) attributes {dimension_semantics = [#tpu.dimension_semantics<parallel>], iteration_bounds = array<i64: 1>, scalar_prefetch = 0 : i64, scratch_operands = 0 : i64, tpu.core_type = #tpu.core_type<tc>, window_params = [{transform_indices = @transform_0, window_bounds = array<i64: 8, 1024>}, {transform_indices = @transform_1, window_bounds = array<i64: 8, 24>}, {pipeline_mode = #tpu.pipeline_mode<synchronous>, transform_indices = @transform_2, window_bounds = array<i64: 1024, 128>}, {pipeline_mode = #tpu.pipeline_mode<synchronous>, transform_indices = @transform_3, window_bounds = array<i64: 24, 128>}, {transform_indices = @transform_4, window_bounds = array<i64: 8, 128>}]} {
    %c0 = arith.constant 0 : index
    %c0_0 = arith.constant 0 : index
    %0 = vector.load %arg1[%c0, %c0_0] : memref<8x1024xf32, #tpu.memory_space<vmem>>, vector<8x1024xf32>
    %c0_1 = arith.constant 0 : index
    %c0_2 = arith.constant 0 : index
    %1 = vector.load %arg3[%c0_1, %c0_2] : memref<1024x128xf32, #tpu.memory_space<vmem>>, vector<1024x128xf32>
    %cst = arith.constant dense<0.000000e+00> : vector<8x128xf32>
    %2 = tpu.matmul %0, %1, %cst {dimension_numbers = #tpu.dot_dimension_numbers<[1], [0], [0], [1], [0, 0, 1, 1], [], []>} : vector<8x1024xf32>, vector<1024x128xf32>, vector<8x128xf32> -> vector<8x128xf32>
    %c0_3 = arith.constant 0 : index
    %c0_4 = arith.constant 0 : index
    %3 = vector.load %arg2[%c0_3, %c0_4] : memref<8x24xf32, #tpu.memory_space<vmem>>, vector<8x24xf32>
    %c0_5 = arith.constant 0 : index
    %c0_6 = arith.constant 0 : index
    %4 = vector.load %arg4[%c0_5, %c0_6] : memref<24x128xf32, #tpu.memory_space<vmem>>, vector<24x128xf32>
    %cst_7 = arith.constant dense<0.000000e+00> : vector<8x128xf32>
    %5 = tpu.matmul %3, %4, %cst_7 {dimension_numbers = #tpu.dot_dimension_numbers<[1], [0], [0], [1], [0, 0, 1, 1], [], []>} : vector<8x24xf32>, vector<24x128xf32>, vector<8x128xf32> -> vector<8x128xf32>
    %6 = arith.addf %2, %5 : vector<8x128xf32>
    %c0_8 = arith.constant 0 : index
    %c0_9 = arith.constant 0 : index
    %7 = vector.load %arg5[%c0_8, %c0_9] : memref<8x128xf32, #tpu.memory_space<vmem>>, vector<8x128xf32>
    tpu.vector_store %arg5[%c0_8, %c0_9], %6 {strides = array<i32>} : memref<8x128xf32, #tpu.memory_space<vmem>>, vector<8x128xf32>,
    return
  }
  func.func @transform_0(%arg0: i32) -> (i32, i32) {
    %c0_i32 = arith.constant 0 : i32
    %c0_i32_0 = arith.constant 0 : i32
    return %arg0, %c0_i32 : i32, i32
  }
  func.func @transform_1(%arg0: i32) -> (i32, i32) {
    %c0_i32 = arith.constant 0 : i32
    %c0_i32_0 = arith.constant 0 : i32
    return %arg0, %c0_i32 : i32, i32
  }
  func.func @transform_2(%arg0: i32) -> (i32, i32) {
    %c0_i32 = arith.constant 0 : i32
    %c0_i32_0 = arith.constant 0 : i32
    %c0_i32_1 = arith.constant 0 : i32
    return %c0_i32, %c0_i32_0 : i32, i32
  }
  func.func @transform_3(%arg0: i32) -> (i32, i32) {
    %c0_i32 = arith.constant 0 : i32
    %c0_i32_0 = arith.constant 0 : i32
    %c0_i32_1 = arith.constant 0 : i32
    return %c0_i32, %c0_i32_0 : i32, i32
  }
  func.func @transform_4(%arg0: i32) -> (i32, i32) {
    %c0_i32 = arith.constant 0 : i32
    %c0_i32_0 = arith.constant 0 : i32
    return %arg0, %c0_i32 : i32, i32
  }
}

</mosaic_0001>

<llo_original>
// kernel: _forward.1
$region0: #{_forward.1}
  #allocation0 [shape = 'u32[]', space=smem, size = 0x4, offset = 0x4, fixed_abs, tag = 'smem constant byte address 0x4 - core index']
  #allocation1 [shape = 'u32[72,128]{1,0:T(1,128)}', space=vmem, size = 0x9000, scoped, tag = 'internal scratch']
  %s0 = inlined_call_operand.vmem [shape: f32[8,1024], index: 0, kind: input, shape index: {}]
  %s1 = inlined_call_operand.vmem [shape: f32[8,24], index: 1, kind: input, shape index: {}]
  %s2 = inlined_call_operand.hbm [shape: f32[1024,128], index: 2, kind: input, shape index: {}]
  %s3 = inlined_call_operand.vmem [shape: f32[24,128], index: 3, kind: input, shape index: {}]
  %s4 = inlined_call_operand.vmem [shape: f32[8,128], index: 4, kind: output, shape index: {}]
  %s5 = sld [smem:[#allocation0]]
  $region30: #{_forward.1} parent=0
    _
  %s7 = ssub.s32 1, %s5
  %s8 = scalar_select 0, %s7, %s5
  $region1: #{_forward.1} parent=0
    #allocation2 [shape = 'u8[524288]{0}', space=vmem, size = 0x80000, scoped, tag = 'input window, operand 2, single buffered']
    #allocation3 [shape = 's32[1]{0}', space=sflag, size = 0x4, scoped, tag = 'scoped memory for _forward.1']
    %9 = vsyncpa [#allocation3], 0
    // Predicated region
    $region2: #{_forward.1} parent=1 // pred_check
      _
    $region3: #{_forward.1} parent=1 // pred_check_branch
      %11 = sbr.rel (0) target = $region5
    $region4: #{_forward.1} parent=1 // pred_region
      _
    $region5: #{_forward.1} parent=1 // pred_fallthru
      _
    // Predicated region
    $region6: #{_forward.1} parent=1 // pred_check
      _
    $region7: #{_forward.1} parent=1 // pred_check_branch
      %13 = sbr.rel (0) target = $region9
    $region8: #{_forward.1} parent=1 // pred_region
      _
    $region9: #{_forward.1} parent=1 // pred_fallthru
      _
    // Predicated region
    $region10: #{_forward.1} parent=1 // pred_check
      _
    $region11: #{_forward.1} parent=1 // pred_check_branch
      %15 = sbr.rel (0) target = $region13
    $region12: #{_forward.1} parent=1 // pred_region
      %17 = vsyncadd [#allocation3], 0
      %s18 = sshll.u32 %s2, 4
      %s19 = int_to_ptr.hbm [resolvable:$true] %s18
      %s20 = sshll.u32 [#allocation2], 4
      %s21 = int_to_ptr.vmem [resolvable:$true] %s20
      %26 = dma.hbm_to_vmem [thread:$0]  %s19, 16384, %s21, [#allocation3], 128, 128, 8
    $region13: #{_forward.1} parent=1 // pred_fallthru
      _
    // Predicated region
    $region14: #{_forward.1} parent=1 // pred_check
      _
    $region15: #{_forward.1} parent=1 // pred_check_branch
      %28 = sbr.rel (0) target = $region17
    $region16: #{_forward.1} parent=1 // pred_region
      _
    $region17: #{_forward.1} parent=1 // pred_fallthru
      _
    // Predicated region
    $region18: #{_forward.1} parent=1 // pred_check
      _
    $region19: #{_forward.1} parent=1 // pred_check_branch
      %30 = sbr.rel (0) target = $region21
    $region20: #{_forward.1} parent=1 // pred_region
      %32 = dma.done [#allocation3], 16384
    $region21: #{_forward.1} parent=1 // pred_fallthru
      _
    %v33 = vld [vmem:[%s0] sm:$0xff]
    %v34 = vld [vmem:[%s0 + $0x8] sm:$0xff]
    %v35 = vld [vmem:[%s0 + $0x10] sm:$0xff]
    %v36 = vld [vmem:[%s0 + $0x18] sm:$0xff]
    %v37 = vld [vmem:[%s0 + $0x20] sm:$0xff]
    %v38 = vld [vmem:[%s0 + $0x28] sm:$0xff]
    %v39 = vld [vmem:[%s0 + $0x30] sm:$0xff]
    %v40 = vld [vmem:[%s0 + $0x38] sm:$0xff]
    %v41 = vld [vmem:[#allocation2] sm:$0xff]
    %v42 = vld [vmem:[#allocation2 + $0x8] sm:$0xff]
    %v43 = vld [vmem:[#allocation2 + $0x10] sm:$0xff]
    %v44 = vld [vmem:[#allocation2 + $0x18] sm:$0xff]
    %v45 = vld [vmem:[#allocation2 + $0x20] sm:$0xff]
    %v46 = vld [vmem:[#allocation2 + $0x28] sm:$0xff]
    %v47 = vld [vmem:[#allocation2 + $0x30] sm:$0xff]
    %v48 = vld [vmem:[#allocation2 + $0x38] sm:$0xff]
    %v49 = vld [vmem:[#allocation2 + $0x40] sm:$0xff]
    %v50 = vld [vmem:[#allocation2 + $0x48] sm:$0xff]
    %v51 = vld [vmem:[#allocation2 + $0x50] sm:$0xff]
    %v52 = vld [vmem:[#allocation2 + $0x58] sm:$0xff]
    %v53 = vld [vmem:[#allocation2 + $0x60] sm:$0xff]
    %v54 = vld [vmem:[#allocation2 + $0x68] sm:$0xff]
    %v55 = vld [vmem:[#allocation2 + $0x70] sm:$0xff]
    %v56 = vld [vmem:[#allocation2 + $0x78] sm:$0xff]
    %v57 = vld [vmem:[#allocation2 + $0x80] sm:$0xff]
    %v58 = vld [vmem:[#allocation2 + $0x88] sm:$0xff]
    %v59 = vld [vmem:[#allocation2 + $0x90] sm:$0xff]
    %v60 = vld [vmem:[#allocation2 + $0x98] sm:$0xff]
    %v61 = vld [vmem:[#allocation2 + $0xa0] sm:$0xff]
    %v62 = vld [vmem:[#allocation2 + $0xa8] sm:$0xff]
    %v63 = vld [vmem:[#allocation2 + $0xb0] sm:$0xff]
    %v64 = vld [vmem:[#allocation2 + $0xb8] sm:$0xff]
    %v65 = vld [vmem:[#allocation2 + $0xc0] sm:$0xff]
    %v66 = vld [vmem:[#allocation2 + $0xc8] sm:$0xff]
    %v67 = vld [vmem:[#allocation2 + $0xd0] sm:$0xff]
    %v68 = vld [vmem:[#allocation2 + $0xd8] sm:$0xff]
    %v69 = vld [vmem:[#allocation2 + $0xe0] sm:$0xff]
    %v70 = vld [vmem:[#allocation2 + $0xe8] sm:$0xff]
    %v71 = vld [vmem:[#allocation2 + $0xf0] sm:$0xff]
    %v72 = vld [vmem:[#allocation2 + $0xf8] sm:$0xff]
    %v73 = vld [vmem:[#allocation2 + $0x100] sm:$0xff]
    %v74 = vld [vmem:[#allocation2 + $0x108] sm:$0xff]
    %v75 = vld [vmem:[#allocation2 + $0x110] sm:$0xff]
    %v76 = vld [vmem:[#allocation2 + $0x118] sm:$0xff]
    %v77 = vld [vmem:[#allocation2 + $0x120] sm:$0xff]
    %v78 = vld [vmem:[#allocation2 + $0x128] sm:$0xff]
    %v79 = vld [vmem:[#allocation2 + $0x130] sm:$0xff]
    %v80 = vld [vmem:[#allocation2 + $0x138] sm:$0xff]
    %v81 = vld [vmem:[#allocation2 + $0x140] sm:$0xff]
    %v82 = vld [vmem:[#allocation2 + $0x148] sm:$0xff]
    %v83 = vld [vmem:[#allocation2 + $0x150] sm:$0xff]
    %v84 = vld [vmem:[#allocation2 + $0x158] sm:$0xff]
    %v85 = vld [vmem:[#allocation2 + $0x160] sm:$0xff]
    %v86 = vld [vmem:[#allocation2 + $0x168] sm:$0xff]
    %v87 = vld [vmem:[#allocation2 + $0x170] sm:$0xff]
    %v88 = vld [vmem:[#allocation2 + $0x178] sm:$0xff]
    %v89 = vld [vmem:[#allocation2 + $0x180] sm:$0xff]
    %v90 = vld [vmem:[#allocation2 + $0x188] sm:$0xff]
    %v91 = vld [vmem:[#allocation2 + $0x190] sm:$0xff]
    %v92 = vld [vmem:[#allocation2 + $0x198] sm:$0xff]
    %v93 = vld [vmem:[#allocation2 + $0x1a0] sm:$0xff]
    %v94 = vld [vmem:[#allocation2 + $0x1a8] sm:$0xff]
    %v95 = vld [vmem:[#allocation2 + $0x1b0] sm:$0xff]
    %v96 = vld [vmem:[#allocation2 + $0x1b8] sm:$0xff]
    %v97 = vld [vmem:[#allocation2 + $0x1c0] sm:$0xff]
    %v98 = vld [vmem:[#allocation2 + $0x1c8] sm:$0xff]
    %v99 = vld [vmem:[#allocation2 + $0x1d0] sm:$0xff]
    %v100 = vld [vmem:[#allocation2 + $0x1d8] sm:$0xff]
    %v101 = vld [vmem:[#allocation2 + $0x1e0] sm:$0xff]
    %v102 = vld [vmem:[#allocation2 + $0x1e8] sm:$0xff]
    %v103 = vld [vmem:[#allocation2 + $0x1f0] sm:$0xff]
    %v104 = vld [vmem:[#allocation2 + $0x1f8] sm:$0xff]
    %v105 = vld [vmem:[#allocation2 + $0x200] sm:$0xff]
    %v106 = vld [vmem:[#allocation2 + $0x208] sm:$0xff]
    %v107 = vld [vmem:[#allocation2 + $0x210] sm:$0xff]
    %v108 = vld [vmem:[#allocation2 + $0x218] sm:$0xff]
    %v109 = vld [vmem:[#allocation2 + $0x220] sm:$0xff]
    %v110 = vld [vmem:[#allocation2 + $0x228] sm:$0xff]
    %v111 = vld [vmem:[#allocation2 + $0x230] sm:$0xff]
    %v112 = vld [vmem:[#allocation2 + $0x238] sm:$0xff]
    %v113 = vld [vmem:[#allocation2 + $0x240] sm:$0xff]
    %v114 = vld [vmem:[#allocation2 + $0x248] sm:$0xff]
    %v115 = vld [vmem:[#allocation2 + $0x250] sm:$0xff]
    %v116 = vld [vmem:[#allocation2 + $0x258] sm:$0xff]
    %v117 = vld [vmem:[#allocation2 + $0x260] sm:$0xff]
    %v118 = vld [vmem:[#allocation2 + $0x268] sm:$0xff]
    %v119 = vld [vmem:[#allocation2 + $0x270] sm:$0xff]
    %v120 = vld [vmem:[#allocation2 + $0x278] sm:$0xff]
    %v121 = vld [vmem:[#allocation2 + $0x280] sm:$0xff]
    %v122 = vld [vmem:[#allocation2 + $0x288] sm:$0xff]
    %v123 = vld [vmem:[#allocation2 + $0x290] sm:$0xff]
    %v124 = vld [vmem:[#allocation2 + $0x298] sm:$0xff]
    %v125 = vld [vmem:[#allocation2 + $0x2a0] sm:$0xff]
    %v126 = vld [vmem:[#allocation2 + $0x2a8] sm:$0xff]
    %v127 = vld [vmem:[#allocation2 + $0x2b0] sm:$0xff]
    %v128 = vld [vmem:[#allocation2 + $0x2b8] sm:$0xff]
    %v129 = vld [vmem:[#allocation2 + $0x2c0] sm:$0xff]
    %v130 = vld [vmem:[#allocation2 + $0x2c8] sm:$0xff]
    %v131 = vld [vmem:[#allocation2 + $0x2d0] sm:$0xff]
    %v132 = vld [vmem:[#allocation2 + $0x2d8] sm:$0xff]
    %v133 = vld [vmem:[#allocation2 + $0x2e0] sm:$0xff]
    %v134 = vld [vmem:[#allocation2 + $0x2e8] sm:$0xff]
    %v135 = vld [vmem:[#allocation2 + $0x2f0] sm:$0xff]
    %v136 = vld [vmem:[#allocation2 + $0x2f8] sm:$0xff]
    %v137 = vld [vmem:[#allocation2 + $0x300] sm:$0xff]
    %v138 = vld [vmem:[#allocation2 + $0x308] sm:$0xff]
    %v139 = vld [vmem:[#allocation2 + $0x310] sm:$0xff]
    %v140 = vld [vmem:[#allocation2 + $0x318] sm:$0xff]
    %v141 = vld [vmem:[#allocation2 + $0x320] sm:$0xff]
    %v142 = vld [vmem:[#allocation2 + $0x328] sm:$0xff]
    %v143 = vld [vmem:[#allocation2 + $0x330] sm:$0xff]
    %v144 = vld [vmem:[#allocation2 + $0x338] sm:$0xff]
    %v145 = vld [vmem:[#allocation2 + $0x340] sm:$0xff]
    %v146 = vld [vmem:[#allocation2 + $0x348] sm:$0xff]
    %v147 = vld [vmem:[#allocation2 + $0x350] sm:$0xff]
    %v148 = vld [vmem:[#allocation2 + $0x358] sm:$0xff]
    %v149 = vld [vmem:[#allocation2 + $0x360] sm:$0xff]
    %v150 = vld [vmem:[#allocation2 + $0x368] sm:$0xff]
    %v151 = vld [vmem:[#allocation2 + $0x370] sm:$0xff]
    %v152 = vld [vmem:[#allocation2 + $0x378] sm:$0xff]
    %v153 = vld [vmem:[#allocation2 + $0x380] sm:$0xff]
    %v154 = vld [vmem:[#allocation2 + $0x388] sm:$0xff]
    %v155 = vld [vmem:[#allocation2 + $0x390] sm:$0xff]
    %v156 = vld [vmem:[#allocation2 + $0x398] sm:$0xff]
    %v157 = vld [vmem:[#allocation2 + $0x3a0] sm:$0xff]
    %v158 = vld [vmem:[#allocation2 + $0x3a8] sm:$0xff]
    %v159 = vld [vmem:[#allocation2 + $0x3b0] sm:$0xff]
    %v160 = vld [vmem:[#allocation2 + $0x3b8] sm:$0xff]
    %v161 = vld [vmem:[#allocation2 + $0x3c0] sm:$0xff]
    %v162 = vld [vmem:[#allocation2 + $0x3c8] sm:$0xff]
    %v163 = vld [vmem:[#allocation2 + $0x3d0] sm:$0xff]
    %v164 = vld [vmem:[#allocation2 + $0x3d8] sm:$0xff]
    %v165 = vld [vmem:[#allocation2 + $0x3e0] sm:$0xff]
    %v166 = vld [vmem:[#allocation2 + $0x3e8] sm:$0xff]
    %v167 = vld [vmem:[#allocation2 + $0x3f0] sm:$0xff]
    %v168 = vld [vmem:[#allocation2 + $0x3f8] sm:$0xff]
    %v169 = vld [vmem:[%s1] sm:$0xff]
    %v170 = vld [vmem:[%s3] sm:$0xff]
    %v171 = vld [vmem:[%s3 + $0x8] sm:$0xff]
    %v172 = vld [vmem:[%s3 + $0x10] sm:$0xff]
    %vm173 = vcmask 195584
    %v175 = vsel %vm173, %v169, 0
    %177 = vmatpush.msra.mxu0 0.0
    %178 = vmatpush.msra.mxu0 0.0
    %179 = vmatpush.msra.mxu0 0.0
    %180 = vmatpush.msra.mxu0 0.0
    %181 = vmatpush.msra.mxu0 0.0
    %182 = vmatpush.msra.mxu0 0.0
    %183 = vmatpush.msra.mxu0 0.0
    %184 = vmatpush.msra.mxu0 0.0
    %185 = vmatpush.msra.mxu0 0.0
    %186 = vmatpush.msra.mxu0 0.0
    %187 = vmatpush.msra.mxu0 0.0
    %188 = vmatpush.msra.mxu0 0.0
    %189 = vmatpush.msra.mxu0 0.0
    %190 = vmatpush.msra.mxu0 %v172
    %191 = vmatpush.msra.mxu0 %v171
    %192 = vmatpush.msra.mxu0 %v170
    %193 = vmatmul.f32.gmra.mxu0 %v175
    %v194 = vpop.f32.mrf.mxu0
    %v195 = vadd.f32 0.0, %v194
    %196 = vdwg.mxu0
    %197 = vmatpush.msra.mxu0 %v56
    %198 = vmatpush.msra.mxu0 %v55
    %199 = vmatpush.msra.mxu0 %v54
    %200 = vmatpush.msra.mxu0 %v53
    %201 = vmatpush.msra.mxu0 %v52
    %202 = vmatpush.msra.mxu0 %v51
    %203 = vmatpush.msra.mxu0 %v50
    %204 = vmatpush.msra.mxu0 %v49
    %205 = vmatpush.msra.mxu0 %v48
    %206 = vmatpush.msra.mxu0 %v47
    %207 = vmatpush.msra.mxu0 %v46
    %208 = vmatpush.msra.mxu0 %v45
    %209 = vmatpush.msra.mxu0 %v44
    %210 = vmatpush.msra.mxu0 %v43
    %211 = vmatpush.msra.mxu0 %v42
    %212 = vmatpush.msra.mxu0 %v41
    %213 = vmatmul.f32.gmra.mxu0 %v33
    %v214 = vpop.f32.mrf.mxu0
    %v215 = vadd.f32 %v195, %v214
    %216 = vdwg.mxu0
    %217 = vmatpush.msra.mxu0 %v72
    %218 = vmatpush.msra.mxu0 %v71
    %219 = vmatpush.msra.mxu0 %v70
    %220 = vmatpush.msra.mxu0 %v69
    %221 = vmatpush.msra.mxu0 %v68
    %222 = vmatpush.msra.mxu0 %v67
    %223 = vmatpush.msra.mxu0 %v66
    %224 = vmatpush.msra.mxu0 %v65
    %225 = vmatpush.msra.mxu0 %v64
    %226 = vmatpush.msra.mxu0 %v63
    %227 = vmatpush.msra.mxu0 %v62
    %228 = vmatpush.msra.mxu0 %v61
    %229 = vmatpush.msra.mxu0 %v60
    %230 = vmatpush.msra.mxu0 %v59
    %231 = vmatpush.msra.mxu0 %v58
    %232 = vmatpush.msra.mxu0 %v57
    %233 = vmatmul.f32.gmra.mxu0 %v34
    %v234 = vpop.f32.mrf.mxu0
    %v235 = vadd.f32 %v215, %v234
    %236 = vdwg.mxu0
    %237 = vmatpush.msra.mxu0 %v88
    %238 = vmatpush.msra.mxu0 %v87
    %239 = vmatpush.msra.mxu0 %v86
    %240 = vmatpush.msra.mxu0 %v85
    %241 = vmatpush.msra.mxu0 %v84
    %242 = vmatpush.msra.mxu0 %v83
    %243 = vmatpush.msra.mxu0 %v82
    %244 = vmatpush.msra.mxu0 %v81
    %245 = vmatpush.msra.mxu0 %v80
    %246 = vmatpush.msra.mxu0 %v79
    %247 = vmatpush.msra.mxu0 %v78
    %248 = vmatpush.msra.mxu0 %v77
    %249 = vmatpush.msra.mxu0 %v76
    %250 = vmatpush.msra.mxu0 %v75
    %251 = vmatpush.msra.mxu0 %v74
    %252 = vmatpush.msra.mxu0 %v73
    %253 = vmatmul.f32.gmra.mxu0 %v35
    %v254 = vpop.f32.mrf.mxu0
    %v255 = vadd.f32 %v235, %v254
    %256 = vdwg.mxu0
    %257 = vmatpush.msra.mxu0 %v104
    %258 = vmatpush.msra.mxu0 %v103
    %259 = vmatpush.msra.mxu0 %v102
    %260 = vmatpush.msra.mxu0 %v101
    %261 = vmatpush.msra.mxu0 %v100
    %262 = vmatpush.msra.mxu0 %v99
    %263 = vmatpush.msra.mxu0 %v98
    %264 = vmatpush.msra.mxu0 %v97
    %265 = vmatpush.msra.mxu0 %v96
    %266 = vmatpush.msra.mxu0 %v95
    %267 = vmatpush.msra.mxu0 %v94
    %268 = vmatpush.msra.mxu0 %v93
    %269 = vmatpush.msra.mxu0 %v92
    %270 = vmatpush.msra.mxu0 %v91
    %271 = vmatpush.msra.mxu0 %v90
    %272 = vmatpush.msra.mxu0 %v89
    %273 = vmatmul.f32.gmra.mxu0 %v36
    %v274 = vpop.f32.mrf.mxu0
    %v275 = vadd.f32 %v255, %v274
    %276 = vdwg.mxu0
    %277 = vmatpush.msra.mxu0 %v120
    %278 = vmatpush.msra.mxu0 %v119
    %279 = vmatpush.msra.mxu0 %v118
    %280 = vmatpush.msra.mxu0 %v117
    %281 = vmatpush.msra.mxu0 %v116
    %282 = vmatpush.msra.mxu0 %v115
    %283 = vmatpush.msra.mxu0 %v114
    %284 = vmatpush.msra.mxu0 %v113
    %285 = vmatpush.msra.mxu0 %v112
    %286 = vmatpush.msra.mxu0 %v111
    %287 = vmatpush.msra.mxu0 %v110
    %288 = vmatpush.msra.mxu0 %v109
    %289 = vmatpush.msra.mxu0 %v108
    %290 = vmatpush.msra.mxu0 %v107
    %291 = vmatpush.msra.mxu0 %v106
    %292 = vmatpush.msra.mxu0 %v105
    %293 = vmatmul.f32.gmra.mxu0 %v37
    %v294 = vpop.f32.mrf.mxu0
    %v295 = vadd.f32 %v275, %v294
    %296 = vdwg.mxu0
    %297 = vmatpush.msra.mxu0 %v136
    %298 = vmatpush.msra.mxu0 %v135
    %299 = vmatpush.msra.mxu0 %v134
    %300 = vmatpush.msra.mxu0 %v133
    %301 = vmatpush.msra.mxu0 %v132
    %302 = vmatpush.msra.mxu0 %v131
    %303 = vmatpush.msra.mxu0 %v130
    %304 = vmatpush.msra.mxu0 %v129
    %305 = vmatpush.msra.mxu0 %v128
    %306 = vmatpush.msra.mxu0 %v127
    %307 = vmatpush.msra.mxu0 %v126
    %308 = vmatpush.msra.mxu0 %v125
    %309 = vmatpush.msra.mxu0 %v124
    %310 = vmatpush.msra.mxu0 %v123
    %311 = vmatpush.msra.mxu0 %v122
    %312 = vmatpush.msra.mxu0 %v121
    %313 = vmatmul.f32.gmra.mxu0 %v38
    %v314 = vpop.f32.mrf.mxu0
    %v315 = vadd.f32 %v295, %v314
    %316 = vdwg.mxu0
    %317 = vmatpush.msra.mxu0 %v152
    %318 = vmatpush.msra.mxu0 %v151
    %319 = vmatpush.msra.mxu0 %v150
    %320 = vmatpush.msra.mxu0 %v149
    %321 = vmatpush.msra.mxu0 %v148
    %322 = vmatpush.msra.mxu0 %v147
    %323 = vmatpush.msra.mxu0 %v146
    %324 = vmatpush.msra.mxu0 %v145
    %325 = vmatpush.msra.mxu0 %v144
    %326 = vmatpush.msra.mxu0 %v143
    %327 = vmatpush.msra.mxu0 %v142
    %328 = vmatpush.msra.mxu0 %v141
    %329 = vmatpush.msra.mxu0 %v140
    %330 = vmatpush.msra.mxu0 %v139
    %331 = vmatpush.msra.mxu0 %v138
    %332 = vmatpush.msra.mxu0 %v137
    %333 = vmatmul.f32.gmra.mxu0 %v39
    %v334 = vpop.f32.mrf.mxu0
    %v335 = vadd.f32 %v315, %v334
    %336 = vdwg.mxu0
    %337 = vmatpush.msra.mxu0 %v168
    %338 = vmatpush.msra.mxu0 %v167
    %339 = vmatpush.msra.mxu0 %v166
    %340 = vmatpush.msra.mxu0 %v165
    %341 = vmatpush.msra.mxu0 %v164
    %342 = vmatpush.msra.mxu0 %v163
    %343 = vmatpush.msra.mxu0 %v162
    %344 = vmatpush.msra.mxu0 %v161
    %345 = vmatpush.msra.mxu0 %v160
    %346 = vmatpush.msra.mxu0 %v159
    %347 = vmatpush.msra.mxu0 %v158
    %348 = vmatpush.msra.mxu0 %v157
    %349 = vmatpush.msra.mxu0 %v156
    %350 = vmatpush.msra.mxu0 %v155
    %351 = vmatpush.msra.mxu0 %v154
    %352 = vmatpush.msra.mxu0 %v153
    %353 = vmatmul.f32.gmra.mxu0 %v40
    %v354 = vpop.f32.mrf.mxu0
    %v355 = vadd.f32 %v335, %v354
    %356 = vdwg.mxu0
    %357 = vst [vmem:[%s4] sm:$0xff] %v355
    // Predicated region
    $region22: #{_forward.1} parent=1 // pred_check
      _
    $region23: #{_forward.1} parent=1 // pred_check_branch
      %359 = sbr.rel (0) target = $region25
    $region24: #{_forward.1} parent=1 // pred_region
      _
    $region25: #{_forward.1} parent=1 // pred_fallthru
      _
    // Predicated region
    $region26: #{_forward.1} parent=1 // pred_check
      _
    $region27: #{_forward.1} parent=1 // pred_check_branch
      %361 = sbr.rel (0) target = $region29
    $region28: #{_forward.1} parent=1 // pred_region
      _
    $region29: #{_forward.1} parent=1 // pred_fallthru
      _
    %362 = vsyncpa [#allocation3], 1

</llo_original>
